<compile_context>
chip_gen: v7x
topology: tpu7x:2x2x1
jax: 0.10.0
libtpu: 0.0.40
codegen_flags: <defaults>
</compile_context>

<pallas_src>
import jax
import jax.numpy as jnp
from jax.experimental import pallas as pl
from jax.experimental.pallas import tpu as pltpu


def _landmark_dropout_kernel(x_ref, m_ref, o_ref):
    # Single broadcast multiply; the mask row already carries 1/(1-p) in f32.
    # x_ref/o_ref: (tile_r, tile_c); m_ref: (1, tile_c) broadcast over sublanes.
    o_ref[...] = (x_ref[...] * m_ref[...]).astype(o_ref.dtype)


def _hw_target_block_bytes():
    """Per-block HBM-transfer target, keyed on TPU generation."""
    kind = ""
    try:
        kind = jax.devices()[0].device_kind.lower()
    except Exception:
        pass
    if "v7" in kind:
        return 4 << 20   # ~3.2 TB/s per TC: push the per-step-overhead knee out
    if "v5" in kind:
        return 1 << 20   # ~0.8 TB/s: 1 MiB already at the knee, easy on scoped VMEM
    return 2 << 20       # v6e / unknown


def _select_tiles(rows, cols, itemsize, target_bytes):
    """Pick (tile_r, tile_c) for a lane-dense (rows, cols) streaming multiply."""
    packing = max(1, 4 // itemsize)     # f32 -> 1, bf16/fp16 -> 2, int8/fp8 -> 4
    sublane = 8 * packing               # packed sublane tile height
    min_r = rows if rows < sublane else sublane

    if cols < 256 or cols * itemsize * min_r <= target_bytes:
        # Full-width blocks: column axis never tiled -> mask block index is
        # constant, edge blocks only on the row axis.
        tile_c = cols
        tile_r = max(min_r, target_bytes // max(1, cols * itemsize))
        if tile_r >= rows:
            tile_r = rows
        else:
            tile_r = max(sublane, (tile_r // sublane) * sublane)
    else:
        # cols is huge: keep a thin row tile and carry the volume on the lanes.
        tile_r = rows if rows <= sublane else sublane
        tile_c = (target_bytes // max(1, tile_r * itemsize) // 128) * 128
        tile_c = max(128, tile_c)

    # Guarantee >= 2 grid steps on big tensors so v7x's 2 TensorCores both work.
    ncol = -(-cols // tile_c)
    nrow = -(-rows // tile_r)
    if ncol * nrow == 1 and rows * cols * itemsize >= (512 << 10):
        if rows >= 2 * sublane:
            half = -(-rows // 2)
            tile_r = ((half + sublane - 1) // sublane) * sublane
        elif cols >= 256:
            half = -(-cols // 2)
            tile_c = ((half + 127) // 128) * 128
    return tile_r, tile_c


def landmark_dropout(x, seed: int, p: float = 0.5, training: bool = True,
                     donate_x: bool = False):
    if p < 0 or p > 1:
        raise ValueError(
            "dropout probability has to be between 0 and 1, but got {}".format(p))
    if not training or p == 0.0:
        return x
    if p == 1.0:
        # torch module would hit a divide-by-zero; return the well-defined limit.
        return jnp.zeros_like(x)

    B, F, L = x.shape
    if L % 2 != 0:
        raise ValueError("landmark dimension must be even, got {}".format(L))

    scale = 1.0 / (1.0 - p)

    # Bernoulli(1-p) per landmark pair, repeated twice along the landmark axis
    # (torch .repeat), shared by every frame / batch element.  The 1/(1-p)
    # scale is folded into the mask; the mask row stays f32 so low-precision
    # inputs are scaled at full precision inside the kernel.
    keep = jax.random.bernoulli(jax.random.PRNGKey(seed), 1.0 - p, (L // 2,))
    half_mask = keep.astype(jnp.float32) * jnp.float32(scale)            # (L//2,)
    mask_l = jnp.concatenate([half_mask, half_mask])                     # (L,)

    # Lane-dense layout: fold frames into the lane axis -> (B, F*L); the
    # per-row mask is identical for every row.
    rows, cols = B, F * L
    x2d = x.reshape(rows, cols)
    row_mask = jnp.tile(mask_l, F).reshape(1, cols)                      # (1, F*L) f32

    itemsize = jnp.dtype(x.dtype).itemsize
    target_bytes = _hw_target_block_bytes()
    tile_r, tile_c = _select_tiles(rows, cols, itemsize, target_bytes)

    # Columns on the OUTER grid axis: the shared mask block index only changes
    # on the outer axis, so consecutive (inner, row) steps reuse the same mask
    # tile without re-DMA.
    grid = (pl.cdiv(cols, tile_c), pl.cdiv(rows, tile_r))

    block_bytes = tile_r * tile_c * itemsize
    mask_bytes = tile_c * 4
    vmem_limit = int(min(48 << 20, max(16 << 20, 4 * (2 * block_bytes + mask_bytes))))

    cost = pl.CostEstimate(
        flops=rows * cols,
        transcendentals=0,
        bytes_accessed=2 * rows * cols * itemsize + cols * 4,
    )

    out2d = pl.pallas_call(
        _landmark_dropout_kernel,
        out_shape=jax.ShapeDtypeStruct((rows, cols), x.dtype),
        grid=grid,
        in_specs=[
            pl.BlockSpec((tile_r, tile_c), lambda j, i: (i, j)),   # x tile
            pl.BlockSpec((1, tile_c), lambda j, i: (0, j)),        # shared scaled mask
        ],
        out_specs=pl.BlockSpec((tile_r, tile_c), lambda j, i: (i, j)),
        compiler_params=pltpu.CompilerParams(
            dimension_semantics=("parallel", "parallel"),
            vmem_limit_bytes=vmem_limit,
        ),
        cost_estimate=cost,
        input_output_aliases=({0: 0} if donate_x else {}),
    )(x2d, row_mask)

    return out2d.reshape(B, F, L)


if __name__ == "__main__":
    key = jax.random.PRNGKey(0)
    p = 0.5
    scale = 1.0 / (1.0 - p)

    # --- Primary small-shape check (batch=2, frame=8, landmark=32) ---------
    B, F, L = 2, 8, 32
    x = jax.random.normal(key, (B, F, L), dtype=jnp.float32)
    out = jax.block_until_ready(landmark_dropout(x, seed=0, p=p, training=True))

    keep_ref = jax.random.bernoulli(jax.random.PRNGKey(0), 1.0 - p, (L // 2,))
    mask_ref = jnp.concatenate([keep_ref, keep_ref]).astype(jnp.float32)
    ref = x * mask_ref * scale
    assert bool(jnp.allclose(out, ref, rtol=1e-6, atol=1e-6))

    # Structural checks: every landmark column is either fully zeroed or fully
    # scaled by 1/(1-p), identically across batch and frame; the two landmark
    # halves share the same mask (torch .repeat behaviour).
    half = L // 2
    col_zero = (out == 0).all(axis=(0, 1))
    col_scaled = jnp.isclose(out, x * scale, rtol=1e-6, atol=1e-6).all(axis=(0, 1))
    assert bool((col_zero | col_scaled).all())
    assert bool((col_zero[:half] == col_zero[half:]).all())

    # Eval mode is the identity; p == 1 drops everything.
    out_eval = jax.block_until_ready(landmark_dropout(x, seed=0, p=p, training=False))
    assert bool(jnp.array_equal(out_eval, x))
    out_p1 = jax.block_until_ready(landmark_dropout(x, seed=0, p=1.0, training=True))
    assert bool((out_p1 == 0).all())

    # --- Non-128-aligned width + bf16 precision check ----------------------
    B2, F2, L2 = 4, 12, 106     # cols = 1272 (not a multiple of 128)
    x2 = jax.random.normal(jax.random.PRNGKey(1), (B2, F2, L2), dtype=jnp.bfloat16)
    out2 = jax.block_until_ready(landmark_dropout(x2, seed=3, p=p, training=True))
    keep2 = jax.random.bernoulli(jax.random.PRNGKey(3), 1.0 - p, (L2 // 2,))
    mask2 = jnp.concatenate([keep2, keep2]).astype(jnp.float32)
    ref2 = (x2.astype(jnp.float32) * mask2 * scale).astype(jnp.bfloat16)
    assert bool(jnp.allclose(out2.astype(jnp.float32), ref2.astype(jnp.float32),
                             rtol=1e-2, atol=1e-2))
    z2 = (out2.astype(jnp.float32) == 0).all(axis=(0, 1))
    s2 = jnp.isclose(out2.astype(jnp.float32),
                     (x2.astype(jnp.float32) * scale).astype(jnp.bfloat16)
                     .astype(jnp.float32), rtol=1e-2, atol=1e-2).all(axis=(0, 1))
    assert bool((z2 | s2).all())

    # --- Larger shape that exercises a multi-step grid ----------------------
    B3, F3, L3 = 8, 128, 256    # 1 MiB f32 -> >= 2 grid steps guaranteed
    x3 = jax.random.normal(jax.random.PRNGKey(2), (B3, F3, L3), dtype=jnp.float32)
    out3 = jax.block_until_ready(landmark_dropout(x3, seed=7, p=p, training=True))
    keep3 = jax.random.bernoulli(jax.random.PRNGKey(7), 1.0 - p, (L3 // 2,))
    mask3 = jnp.concatenate([keep3, keep3]).astype(jnp.float32)
    ref3 = x3 * mask3 * scale
    assert bool(jnp.allclose(out3, ref3, rtol=1e-6, atol=1e-6))

    print("KERNEL_OK")
</pallas_src>

<mosaic_0001>
module attributes {stable_mosaic.version = 11 : i64} {
  func.func @_landmark_dropout_kernel(%arg0: i32, %arg1: i32, %arg2: memref<2x256xf32, #tpu.memory_space<vmem>>, %arg3: memref<1x256xf32, #tpu.memory_space<vmem>>, %arg4: memref<2x256xf32, #tpu.memory_space<vmem>>) attributes {dimension_semantics = [#tpu.dimension_semantics<parallel>, #tpu.dimension_semantics<parallel>], iteration_bounds = array<i64: 1, 1>, scalar_prefetch = 0 : i64, scratch_operands = 0 : i64, tpu.core_type = #tpu.core_type<tc>, window_params = [{transform_indices = @transform_0, window_bounds = array<i64: 2, 256>}, {transform_indices = @transform_1, window_bounds = array<i64: 1, 256>}, {transform_indices = @transform_2, window_bounds = array<i64: 2, 256>}]} {
    %c0 = arith.constant 0 : index
    %c0_0 = arith.constant 0 : index
    %0 = vector.load %arg2[%c0, %c0_0] : memref<2x256xf32, #tpu.memory_space<vmem>>, vector<2x256xf32>
    %c0_1 = arith.constant 0 : index
    %c0_2 = arith.constant 0 : index
    %1 = vector.load %arg3[%c0_1, %c0_2] : memref<1x256xf32, #tpu.memory_space<vmem>>, vector<1x256xf32>
    %2 = vector.broadcast %1 : vector<1x256xf32> to vector<2x256xf32>
    %3 = arith.mulf %0, %2 : vector<2x256xf32>
    %c0_3 = arith.constant 0 : index
    %c0_4 = arith.constant 0 : index
    %4 = vector.load %arg4[%c0_3, %c0_4] : memref<2x256xf32, #tpu.memory_space<vmem>>, vector<2x256xf32>
    tpu.vector_store %arg4[%c0_3, %c0_4], %3 {strides = array<i32>} : memref<2x256xf32, #tpu.memory_space<vmem>>, vector<2x256xf32>,
    return
  }
  func.func @transform_0(%arg0: i32, %arg1: i32) -> (i32, i32) {
    %c0_i32 = arith.constant 0 : i32
    return %arg1, %arg0 : i32, i32
  }
  func.func @transform_1(%arg0: i32, %arg1: i32) -> (i32, i32) {
    %c0_i32 = arith.constant 0 : i32
    %c0_i32_0 = arith.constant 0 : i32
    return %c0_i32, %arg0 : i32, i32
  }
  func.func @transform_2(%arg0: i32, %arg1: i32) -> (i32, i32) {
    %c0_i32 = arith.constant 0 : i32
    return %arg1, %arg0 : i32, i32
  }
}

</mosaic_0001>

<llo_original>
// kernel: tpu_custom_call.1
$region0: #{tpu_custom_call.1}
  #allocation0 [shape = 'u32[]', space=smem, size = 0x4, offset = 0x4, fixed_abs, tag = 'smem constant byte address 0x4 - core index']
  #allocation1 [shape = 'u32[144,128]{1,0:T(1,128)}', space=vmem, size = 0x12000, scoped, tag = 'internal scratch']
  %s0 = inlined_call_operand.hbm [shape: f32[2,256], index: 0, kind: input, shape index: {}]
  %s1 = inlined_call_operand.vmem [shape: f32[1,256], index: 1, kind: input, shape index: {}]
  %s2 = inlined_call_operand.hbm [shape: f32[2,256], index: 2, kind: output, shape index: {}]
  %s3 = sld [smem:[#allocation0]]
  $region22: #{tpu_custom_call.1} parent=0
    _
  %s5 = ssub.s32 1, %s3
  %s6 = scalar_select 0, %s5, %s3
  $region1: #{tpu_custom_call.1} parent=0
    #allocation2 [shape = 'u8[2048]{0}', space=vmem, size = 0x800, scoped, tag = 'input window, operand 0, single buffered']
    #allocation3 [shape = 's32[1]{0}', space=sflag, size = 0x4, scoped, tag = 'scoped memory for tpu_custom_call.1']
    #allocation4 [shape = 's32[1]{0}', space=sflag, size = 0x4, scoped, tag = 'scoped memory for tpu_custom_call.1']
    #allocation5 [shape = 'u8[2048]{0}', space=vmem, size = 0x800, scoped, tag = 'output window, operand 0, single buffered']
    %7 = vsyncpa [#allocation3], 0
    %8 = vsyncpa [#allocation4], 0
    // Predicated region
    $region2: #{tpu_custom_call.1} parent=1 // pred_check
      _
    $region3: #{tpu_custom_call.1} parent=1 // pred_check_branch
      %10 = sbr.rel (0) target = $region5
    $region4: #{tpu_custom_call.1} parent=1 // pred_region
      %s12 = ssub.s32 64, 64
      %13 = vsyncadd [#allocation3], %s12
      %s15 = sshll.u32 [#allocation2], 4
      %s16 = int_to_ptr.vmem [resolvable:$true] %s15
      %18 = dma.hbm_to_vmem [thread:$0]  %s0, 64, %s16, [#allocation3]
    $region5: #{tpu_custom_call.1} parent=1 // pred_fallthru
      _
    // Predicated region
    $region6: #{tpu_custom_call.1} parent=1 // pred_check
      _
    $region7: #{tpu_custom_call.1} parent=1 // pred_check_branch
      %20 = sbr.rel (0) target = $region9
    $region8: #{tpu_custom_call.1} parent=1 // pred_region
      _
    $region9: #{tpu_custom_call.1} parent=1 // pred_fallthru
      _
    // Predicated region
    $region10: #{tpu_custom_call.1} parent=1 // pred_check
      _
    $region11: #{tpu_custom_call.1} parent=1 // pred_check_branch
      %22 = sbr.rel (0) target = $region13
    $region12: #{tpu_custom_call.1} parent=1 // pred_region
      %23 = dma.done [#allocation3], 64
    $region13: #{tpu_custom_call.1} parent=1 // pred_fallthru
      _
    %v24 = vld [vmem:[#allocation2] sm:$0xf]
    %v25 = vld [vmem:[%s1] sm:$0x3]
    %v27 = vlaneseq
    %v28 = vshrl.u32 %v27, 7
    %v29 = vsub.s32 0, %v28
    %v30 = vrot.slane %v25, %v29
    %v31 = vlaneseq
    %v32 = vshrl.u32 %v31, 7
    %v33 = vsub.s32 1, %v32
    %v34 = vrot.slane %v25, %v33
    %v35 = vcombine.low %v30, %v34
    %v37 = vunpack.c.l.s4 1983009808
    %v38 = vunpack.c.0.s8 %v37
    %v39 = vlaneseq
    %v40 = vshrl.u32 %v39, 7
    %v41 = vsub.s32 %v38, %v40
    %v42 = vrot.slane %v35, %v41
    %v44 = vmul.f32 %v24, %v42
    %45 = vst [vmem:[#allocation5] sm:$0xf] %v44
    // Predicated region
    $region14: #{tpu_custom_call.1} parent=1 // pred_check
      _
    $region15: #{tpu_custom_call.1} parent=1 // pred_check_branch
      %47 = sbr.rel (0) target = $region17
    $region16: #{tpu_custom_call.1} parent=1 // pred_region
      %s49 = ssub.s32 64, 64
      %50 = vsyncadd [#allocation4], %s49
      %s52 = sshll.u32 [#allocation5], 4
      %s53 = int_to_ptr.vmem [resolvable:$true] %s52
      %55 = dma.vmem_to_hbm [thread:$0]  %s53, 64, %s2, [#allocation4]
    $region17: #{tpu_custom_call.1} parent=1 // pred_fallthru
      _
    // Predicated region
    $region18: #{tpu_custom_call.1} parent=1 // pred_check
      _
    $region19: #{tpu_custom_call.1} parent=1 // pred_check_branch
      %57 = sbr.rel (0) target = $region21
    $region20: #{tpu_custom_call.1} parent=1 // pred_region
      %58 = dma.done [#allocation4], 64
    $region21: #{tpu_custom_call.1} parent=1 // pred_fallthru
      _
    %59 = vsyncpa [#allocation3], 1
    %60 = vsyncpa [#allocation4], 1

</llo_original>
